<compile_context>
chip_gen: v5e
topology: v5e:2x2
jax: 0.10.0
libtpu: 0.0.40
codegen_flags: <defaults>
</compile_context>

<pallas_src>
import jax
import jax.numpy as jnp
from jax.experimental import pallas as pl
from jax.experimental.pallas import tpu as pltpu

EPS = 1e-6


def _round_up(n, m):
    return ((n + m - 1) // m) * m


def sublayer_connection_kernel(x_ref, w_ref, b_ref, o_ref):
    """Fused: LayerNorm (unbiased std, affine pre-folded) -> Linear -> residual.

    x_ref: (TM, D)  token tile (input dtype)
    w_ref: (D, D)   bf16 weight with the LN scale folded in (W' = a_2[:,None]*W)
    b_ref: (1, D)   f32 bias with the LN shift folded in   (b' = b_2 @ W + b)
    o_ref: (TM, D)  output tile
    """
    x = x_ref[...].astype(jnp.float32)
    d = x.shape[-1]

    # LayerNorm statistics with torch.std semantics (ddof=1; eps added to std).
    mean = jnp.sum(x, axis=-1, keepdims=True) * (1.0 / d)
    centered = x - mean
    var_unbiased = jnp.sum(centered * centered, axis=-1, keepdims=True) * (1.0 / (d - 1))
    std = jnp.sqrt(var_unbiased)

    # Per-row reciprocal on the EUP; a single (TM, 1) value broadcast-multiplied.
    inv = pl.reciprocal(std + EPS, approx=True)
    normed = centered * inv  # LN affine is folded into w_ref / b_ref.

    # Sublayer Linear on the bf16 MXU path, f32 accumulation, bias folded in.
    y = jnp.dot(normed.astype(jnp.bfloat16), w_ref[...],
                preferred_element_type=jnp.float32) + b_ref[...]

    # TODO(synk): dropout is identity (inference mode); training-mode dropout
    # would use pltpu.prng_seed / pltpu.prng_random_bits.

    # Residual connection in f32, single cast on the store.
    o_ref[...] = (x + y).astype(o_ref.dtype)


def sublayer_connection(x, a_2, b_2, w, b, *, tile_m=256):
    """x: (B, S, D). Returns x + Linear(LayerNorm(x)) with torch LN semantics."""
    B, S, D = x.shape
    M = B * S
    x2 = x.reshape(M, D)

    # Fold LayerNorm affine into the Linear (O(D^2) once vs O(M*D^2) inside the loop).
    a_2 = a_2.astype(jnp.float32)
    b_2 = b_2.astype(jnp.float32)
    w_f32 = w.astype(jnp.float32)
    w_folded = (a_2[:, None] * w_f32).astype(jnp.bfloat16)          # (D, D) bf16
    b_folded = (b_2 @ w_f32 + b.astype(jnp.float32)).reshape(1, D)  # (1, D) f32

    # Tile sizing: multiple of 16 (bf16 sublane packing); clamp for tiny M and
    # pad M to a tile multiple instead of asserting divisibility.
    tile_m = max(16, min(int(tile_m), _round_up(M, 16)))
    M_pad = _round_up(M, tile_m)
    if M_pad != M:
        # Zero rows are harmless: centered==0 -> normed==0; padded outputs are
        # sliced off below.
        x2 = jnp.pad(x2, ((0, M_pad - M), (0, 0)))
    grid_m = M_pad // tile_m

    # VMEM budget: double-buffered x and out tiles (f32) + bf16 W' + bias,
    # plus headroom for compiler scratch; capped for v7x's 64 MiB VMEM.
    vmem_bytes = (2 * 2 * tile_m * D * 4        # x + out tiles, double-buffered, f32
                  + 2 * D * D * 2               # W' (bf16), double-buffered
                  + 2 * D * 4                   # folded bias
                  + (8 << 20))                  # headroom
    vmem_bytes = int(min(vmem_bytes, 64 << 20))

    out = pl.pallas_call(
        sublayer_connection_kernel,
        out_shape=jax.ShapeDtypeStruct((M_pad, D), x.dtype),
        grid_spec=pltpu.PrefetchScalarGridSpec(
            num_scalar_prefetch=0,
            grid=(grid_m,),
            in_specs=[
                pl.BlockSpec((tile_m, D), lambda i: (i, 0)),  # x token tile
                pl.BlockSpec((D, D), lambda i: (0, 0)),       # W' (bf16, resident)
                pl.BlockSpec((1, D), lambda i: (0, 0)),       # b' (f32)
            ],
            out_specs=pl.BlockSpec((tile_m, D), lambda i: (i, 0)),
        ),
        compiler_params=pltpu.CompilerParams(
            dimension_semantics=("parallel",),
            vmem_limit_bytes=vmem_bytes,
        ),
    )(x2, w_folded, b_folded)

    return out[:M].reshape(B, S, D)


if __name__ == "__main__":
    B, S, D = 2, 8, 32  # batch, seq, hidden (size=32)

    key = jax.random.PRNGKey(0)
    kx, kw, kb, ka, kbeta = jax.random.split(key, 5)

    x = jax.random.normal(kx, (B, S, D), dtype=jnp.float32)

    # LayerNorm params (perturbed from ones/zeros so the affine fold is
    # actually exercised; deterministic).
    a_2 = 1.0 + 0.1 * jax.random.normal(ka, (D,), dtype=jnp.float32)
    b_2 = 0.1 * jax.random.normal(kbeta, (D,), dtype=jnp.float32)

    # Deterministic sublayer = Linear(size, size).
    w = jax.random.normal(kw, (D, D), dtype=jnp.float32) * (1.0 / jnp.sqrt(D))
    b = jax.random.normal(kb, (D,), dtype=jnp.float32) * 0.01

    out = sublayer_connection(x, a_2, b_2, w, b)
    jax.block_until_ready(out)

    # Pure-JAX reference (torch semantics: unbiased std, eps added to std).
    xf = x.astype(jnp.float32)
    mean = xf.mean(-1, keepdims=True)
    std = jnp.sqrt(((xf - mean) ** 2).sum(-1, keepdims=True) / (D - 1))
    normed = a_2 * (xf - mean) / (std + EPS) + b_2
    ref = xf + (normed @ w + b)

    # bf16 MXU path + approx reciprocal => loosened tolerance vs f32 reference.
    assert jnp.allclose(out, ref, atol=3e-2, rtol=3e-2), "mismatch vs reference"

    print("KERNEL_OK")
</pallas_src>

<mosaic_0001>
module attributes {stable_mosaic.version = 11 : i64} {
  func.func @sublayer_connection_kernel(%arg0: i32, %arg1: memref<16x32xf32, #tpu.memory_space<vmem>>, %arg2: memref<32x32xbf16, #tpu.memory_space<vmem>>, %arg3: memref<1x32xf32, #tpu.memory_space<vmem>>, %arg4: memref<16x32xf32, #tpu.memory_space<vmem>>) attributes {dimension_semantics = [#tpu.dimension_semantics<parallel>], iteration_bounds = array<i64: 1>, scalar_prefetch = 0 : i64, scratch_operands = 0 : i64, tpu.core_type = #tpu.core_type<tc>, window_params = [{transform_indices = @transform_0, window_bounds = array<i64: 16, 32>}, {pipeline_mode = #tpu.pipeline_mode<synchronous>, transform_indices = @transform_1, window_bounds = array<i64: 32, 32>}, {pipeline_mode = #tpu.pipeline_mode<synchronous>, transform_indices = @transform_2, window_bounds = array<i64: 1, 32>}, {transform_indices = @transform_3, window_bounds = array<i64: 16, 32>}]} {
    %c0 = arith.constant 0 : index
    %c0_0 = arith.constant 0 : index
    %0 = vector.load %arg1[%c0, %c0_0] : memref<16x32xf32, #tpu.memory_space<vmem>>, vector<16x32xf32>
    %cst = arith.constant dense<0.000000e+00> : vector<16xf32>
    %1 = vector.multi_reduction <add>, %0, %cst [1] : vector<16x32xf32> to vector<16xf32>
    %2 = vector.shape_cast %1 : vector<16xf32> to vector<16x1xf32>
    %cst_1 = arith.constant 3.125000e-02 : f32
    %3 = vector.broadcast %cst_1 : f32 to vector<16x1xf32>
    %4 = arith.mulf %2, %3 : vector<16x1xf32>
    %5 = vector.broadcast %4 : vector<16x1xf32> to vector<16x32xf32>
    %6 = arith.subf %0, %5 : vector<16x32xf32>
    %7 = arith.mulf %6, %6 : vector<16x32xf32>
    %cst_2 = arith.constant dense<0.000000e+00> : vector<16xf32>
    %8 = vector.multi_reduction <add>, %7, %cst_2 [1] : vector<16x32xf32> to vector<16xf32>
    %9 = vector.shape_cast %8 : vector<16xf32> to vector<16x1xf32>
    %cst_3 = arith.constant 0.0322580636 : f32
    %10 = vector.broadcast %cst_3 : f32 to vector<16x1xf32>
    %11 = arith.mulf %9, %10 : vector<16x1xf32>
    %12 = math.sqrt %11 : vector<16x1xf32>
    %cst_4 = arith.constant 9.99999997E-7 : f32
    %13 = vector.broadcast %cst_4 : f32 to vector<16x1xf32>
    %14 = arith.addf %12, %13 : vector<16x1xf32>
    %15 = tpu.reciprocal %14 {approx = true} : vector<16x1xf32> -> vector<16x1xf32>
    %16 = vector.broadcast %15 : vector<16x1xf32> to vector<16x32xf32>
    %17 = arith.mulf %6, %16 : vector<16x32xf32>
    %18 = arith.truncf %17 : vector<16x32xf32> to vector<16x32xbf16>
    %c0_5 = arith.constant 0 : index
    %c0_6 = arith.constant 0 : index
    %19 = vector.load %arg2[%c0_5, %c0_6] : memref<32x32xbf16, #tpu.memory_space<vmem>>, vector<32x32xbf16>
    %cst_7 = arith.constant dense<0.000000e+00> : vector<16x32xf32>
    %20 = tpu.matmul %18, %19, %cst_7 {dimension_numbers = #tpu.dot_dimension_numbers<[1], [0], [0], [1], [0, 0, 1, 1], [], []>} : vector<16x32xbf16>, vector<32x32xbf16>, vector<16x32xf32> -> vector<16x32xf32>
    %c0_8 = arith.constant 0 : index
    %c0_9 = arith.constant 0 : index
    %21 = vector.load %arg3[%c0_8, %c0_9] : memref<1x32xf32, #tpu.memory_space<vmem>>, vector<1x32xf32>
    %22 = vector.broadcast %21 : vector<1x32xf32> to vector<16x32xf32>
    %23 = arith.addf %20, %22 : vector<16x32xf32>
    %24 = arith.addf %0, %23 : vector<16x32xf32>
    %c0_10 = arith.constant 0 : index
    %c0_11 = arith.constant 0 : index
    %25 = vector.load %arg4[%c0_10, %c0_11] : memref<16x32xf32, #tpu.memory_space<vmem>>, vector<16x32xf32>
    tpu.vector_store %arg4[%c0_10, %c0_11], %24 {strides = array<i32>} : memref<16x32xf32, #tpu.memory_space<vmem>>, vector<16x32xf32>,
    return
  }
  func.func @transform_0(%arg0: i32) -> (i32, i32) {
    %c0_i32 = arith.constant 0 : i32
    %c0_i32_0 = arith.constant 0 : i32
    return %arg0, %c0_i32 : i32, i32
  }
  func.func @transform_1(%arg0: i32) -> (i32, i32) {
    %c0_i32 = arith.constant 0 : i32
    %c0_i32_0 = arith.constant 0 : i32
    %c0_i32_1 = arith.constant 0 : i32
    return %c0_i32, %c0_i32_0 : i32, i32
  }
  func.func @transform_2(%arg0: i32) -> (i32, i32) {
    %c0_i32 = arith.constant 0 : i32
    %c0_i32_0 = arith.constant 0 : i32
    %c0_i32_1 = arith.constant 0 : i32
    return %c0_i32, %c0_i32_0 : i32, i32
  }
  func.func @transform_3(%arg0: i32) -> (i32, i32) {
    %c0_i32 = arith.constant 0 : i32
    %c0_i32_0 = arith.constant 0 : i32
    return %arg0, %c0_i32 : i32, i32
  }
}

</mosaic_0001>

<llo_original>
// kernel: tpu_custom_call.1
$region0: #{tpu_custom_call.1}
  #allocation0 [shape = 'u32[]', space=smem, size = 0x4, offset = 0x4, fixed_abs, tag = 'smem constant byte address 0x4 - core index']
  #allocation1 [shape = 'u32[72,128]{1,0:T(1,128)}', space=vmem, size = 0x9000, scoped, tag = 'internal scratch']
  %s0 = inlined_call_operand.hbm [shape: f32[16,32], index: 0, kind: input, shape index: {}]
  %s1 = inlined_call_operand.hbm [shape: bf16[32,32], index: 1, kind: input, shape index: {}]
  %s2 = inlined_call_operand.vmem [shape: f32[1,32], index: 2, kind: input, shape index: {}]
  %s3 = inlined_call_operand.hbm [shape: f32[16,32], index: 3, kind: output, shape index: {}]
  %s4 = sld [smem:[#allocation0]]
  $region30: #{tpu_custom_call.1} parent=0
    _
  %s6 = ssub.s32 1, %s4
  %s7 = scalar_select 0, %s6, %s4
  $region1: #{tpu_custom_call.1} parent=0
    #allocation2 [shape = 'u8[8192]{0}', space=vmem, size = 0x2000, scoped, tag = 'input window, operand 0, single buffered']
    #allocation3 [shape = 's32[1]{0}', space=sflag, size = 0x4, scoped, tag = 'scoped memory for tpu_custom_call.1']
    #allocation4 [shape = 's32[1]{0}', space=sflag, size = 0x4, scoped, tag = 'scoped memory for tpu_custom_call.1']
    #allocation5 [shape = 'u8[8192]{0}', space=vmem, size = 0x2000, scoped, tag = 'input window, operand 1, single buffered']
    #allocation6 [shape = 's32[1]{0}', space=sflag, size = 0x4, scoped, tag = 'scoped memory for tpu_custom_call.1']
    #allocation7 [shape = 'u8[8192]{0}', space=vmem, size = 0x2000, scoped, tag = 'output window, operand 0, single buffered']
    %8 = vsyncpa [#allocation3], 0
    %9 = vsyncpa [#allocation6], 0
    %10 = vsyncpa [#allocation4], 0
    // Predicated region
    $region2: #{tpu_custom_call.1} parent=1 // pred_check
      _
    $region3: #{tpu_custom_call.1} parent=1 // pred_check_branch
      %12 = sbr.rel (0) target = $region5
    $region4: #{tpu_custom_call.1} parent=1 // pred_region
      %14 = vsyncadd [#allocation3], 0
      %s15 = sshll.u32 %s0, 4
      %s16 = int_to_ptr.hbm [resolvable:$true] %s15
      %s17 = sshll.u32 [#allocation2], 4
      %s18 = int_to_ptr.vmem [resolvable:$true] %s17
      %23 = dma.hbm_to_vmem [thread:$0]  %s16, 256, %s18, [#allocation3], 128, 128, 8
    $region5: #{tpu_custom_call.1} parent=1 // pred_fallthru
      _
    // Predicated region
    $region6: #{tpu_custom_call.1} parent=1 // pred_check
      _
    $region7: #{tpu_custom_call.1} parent=1 // pred_check_branch
      %25 = sbr.rel (0) target = $region9
    $region8: #{tpu_custom_call.1} parent=1 // pred_region
      %27 = vsyncadd [#allocation6], 0
      %s28 = sshll.u32 %s1, 4
      %s29 = int_to_ptr.hbm [resolvable:$true] %s28
      %s30 = sshll.u32 [#allocation5], 4
      %s31 = int_to_ptr.vmem [resolvable:$true] %s30
      %36 = dma.hbm_to_vmem [thread:$0]  %s29, 256, %s31, [#allocation6], 64, 64, 4
    $region9: #{tpu_custom_call.1} parent=1 // pred_fallthru
      _
    // Predicated region
    $region10: #{tpu_custom_call.1} parent=1 // pred_check
      _
    $region11: #{tpu_custom_call.1} parent=1 // pred_check_branch
      %38 = sbr.rel (0) target = $region13
    $region12: #{tpu_custom_call.1} parent=1 // pred_region
      _
    $region13: #{tpu_custom_call.1} parent=1 // pred_fallthru
      _
    // Predicated region
    $region14: #{tpu_custom_call.1} parent=1 // pred_check
      _
    $region15: #{tpu_custom_call.1} parent=1 // pred_check_branch
      %40 = sbr.rel (0) target = $region17
    $region16: #{tpu_custom_call.1} parent=1 // pred_region
      %42 = dma.done [#allocation3], 256
    $region17: #{tpu_custom_call.1} parent=1 // pred_fallthru
      _
    // Predicated region
    $region18: #{tpu_custom_call.1} parent=1 // pred_check
      _
    $region19: #{tpu_custom_call.1} parent=1 // pred_check_branch
      %44 = sbr.rel (0) target = $region21
    $region20: #{tpu_custom_call.1} parent=1 // pred_region
      %46 = dma.done [#allocation6], 256
    $region21: #{tpu_custom_call.1} parent=1 // pred_fallthru
      _
    %v48 = vld [vmem:[#allocation2] sm:$0xff]
    %v49 = vld [vmem:[#allocation2 + $0x8] sm:$0xff]
    %vm50 = vcmask 261120
    %v51 = vsel %vm50, %v48, 0.0
    %52 = vadd.xlane.f32.xlu0 %v51
    %v53 = vpop.xlane.xlu0 %52
    %v54 = vsel %vm50, %v49, 0.0
    %55 = vadd.xlane.f32.xlu0 %v54
    %v56 = vpop.xlane.xlu0 %55
    %v57 = vmul.f32 %v53, 0.03125
    %v58 = vmul.f32 %v56, 0.03125
    %v59 = vsub.f32 %v48, %v57
    %v60 = vsub.f32 %v49, %v58
    %v61 = vmul.f32 %v59, %v59
    %v62 = vmul.f32 %v60, %v60
    %v63 = vsel %vm50, %v61, 0.0
    %64 = vadd.xlane.f32.xlu0 %v63
    %v65 = vpop.xlane.xlu0 %64
    %v66 = vsel %vm50, %v62, 0.0
    %67 = vadd.xlane.f32.xlu0 %v66
    %v68 = vpop.xlane.xlu0 %67
    %v69 = vmul.f32 %v65, 0.032258064
    %v70 = vmul.f32 %v68, 0.032258064
    %v71 = vrsqrt.pop %v69
    %v72 = vmul.f32 %v71, %v69
    %v73 = vmul.f32 %v72, %v71
    %v74 = vmul.f32 0.5, %v73
    %v75 = vsub.f32 1.5, %v74
    %v76 = vmul.f32 %v71, %v75
    %v77 = vmul.f32 %v69, %v76
    %vm78 = vcmp.eq.f32.partialorder %v69, inf
    %v79 = vsel %vm78, %v69, %v77
    %vm80 = vcmp.eq.f32.partialorder %v69, 0.0
    %v81 = vand.u32 %v69, 2147483648
    %v82 = vsel %vm80, %v81, %v79
    %v83 = vrsqrt.pop %v70
    %v84 = vmul.f32 %v83, %v70
    %v85 = vmul.f32 %v84, %v83
    %v86 = vmul.f32 0.5, %v85
    %v87 = vsub.f32 1.5, %v86
    %v88 = vmul.f32 %v83, %v87
    %v89 = vmul.f32 %v70, %v88
    %vm90 = vcmp.eq.f32.partialorder %v70, inf
    %v91 = vsel %vm90, %v70, %v89
    %vm92 = vcmp.eq.f32.partialorder %v70, 0.0
    %v93 = vand.u32 %v70, 2147483648
    %v94 = vsel %vm92, %v93, %v91
    %v95 = vadd.f32 %v82, 1e-06
    %v96 = vadd.f32 %v94, 1e-06
    %v97 = vrcp.pop %v95
    %v98 = vrcp.pop %v96
    %v99 = vmul.f32 %v59, %v97
    %v100 = vmul.f32 %v60, %v98
    %v101 = vpack.c.bf16 %v100, %v99
    %v102 = vld [vmem:[#allocation5] sm:$0xf]
    %v103 = vld [vmem:[#allocation5 + $0x4] sm:$0xf]
    %v104 = vld [vmem:[#allocation5 + $0x8] sm:$0xf]
    %v105 = vld [vmem:[#allocation5 + $0xc] sm:$0xf]
    %v106 = vld [vmem:[%s2] sm:$0x1]
    %v108 = vperm.slane %v106, 0
    %v114 = vunpack.c.l.b16 %v102
    %v115 = vunpack.c.l.b16 %v103
    %v116 = vunpack.c.l.b16 %v104
    %v117 = vunpack.c.l.b16 %v105
    %v118 = vpack.c.b16 %v115, %v114
    %v119 = vpack.c.b16 %v117, %v116
    %v123 = vsel %vm50, %v101, 0
    %125 = vmatpush.bf16.msra.mxu0 0
    %126 = vmatpush.bf16.msra.mxu0 0
    %127 = vmatpush.bf16.msra.mxu0 0
    %128 = vmatpush.bf16.msra.mxu0 0
    %129 = vmatpush.bf16.msra.mxu0 0
    %130 = vmatpush.bf16.msra.mxu0 0
    %131 = vmatpush.bf16.msra.mxu0 %v119
    %132 = vmatpush.bf16.msra.mxu0 %v118
    %133 = vmatmul.bf16.gmra.mxu0 %v123
    %v134 = vpop.f32.mrf.mxu0
    %v135 = vadd.f32 %v108, %v134
    %v136 = vpop.f32.mrf.mxu0
    %v137 = vadd.f32 %v108, %v136
    %138 = vdwg.mxu0
    %v139 = vadd.f32 %v48, %v135
    %v140 = vadd.f32 %v49, %v137
    %141 = vst.msk [vmem:[#allocation7] sm:$0xff] %vm50, %v139
    %142 = vst.msk [vmem:[#allocation7 + $0x8] sm:$0xff] %vm50, %v140
    // Predicated region
    $region22: #{tpu_custom_call.1} parent=1 // pred_check
      _
    $region23: #{tpu_custom_call.1} parent=1 // pred_check_branch
      %144 = sbr.rel (0) target = $region25
    $region24: #{tpu_custom_call.1} parent=1 // pred_region
      %146 = vsyncadd [#allocation4], 0
      %s147 = sshll.u32 [#allocation7], 4
      %s148 = int_to_ptr.vmem [resolvable:$true] %s147
      %s149 = sshll.u32 %s3, 4
      %s150 = int_to_ptr.hbm [resolvable:$true] %s149
      %155 = dma.vmem_to_hbm [thread:$0]  %s148, 256, %s150, [#allocation4], 128, 128, 8
    $region25: #{tpu_custom_call.1} parent=1 // pred_fallthru
      _
    // Predicated region
    $region26: #{tpu_custom_call.1} parent=1 // pred_check
      _
    $region27: #{tpu_custom_call.1} parent=1 // pred_check_branch
      %157 = sbr.rel (0) target = $region29
    $region28: #{tpu_custom_call.1} parent=1 // pred_region
      %159 = dma.done [#allocation4], 256
    $region29: #{tpu_custom_call.1} parent=1 // pred_fallthru
      _
    %160 = vsyncpa [#allocation3], 1
    %161 = vsyncpa [#allocation6], 1
    %162 = vsyncpa [#allocation4], 1

</llo_original>
